<compile_context>
chip_gen: v7x
topology: tpu7x:2x2x1
jax: 0.10.0
libtpu: 0.0.40
codegen_flags: <defaults>
</compile_context>

<pallas_src>
import functools

import jax
import jax.numpy as jnp
from jax.experimental import pallas as pl
from jax.experimental.pallas import tpu as pltpu

_SUBLANE = 8
_LANE = 128


def _proj_kernel(x_ref, w_ref, b_ref, o_ref):
    """Single-step projection: the entire padded problem lives in VMEM.

    x_ref : (Bp, S)   style batch (sublane-padded)
    w_ref : (S, Dp)   transposed, lane-padded projection weight (bf16)
    b_ref : (1, Dp)   lane-padded bias (f32)
    o_ref : (Bp, Dp)  output
    """
    acc = jnp.dot(x_ref[...], w_ref[...], preferred_element_type=jnp.float32)
    o_ref[...] = (acc + b_ref[...]).astype(o_ref.dtype)


def prepare_kernel_predictor_params(w, b):
    """One-time parameter prep (NOT in the per-call hot path).

    w: (D, style_dim) PyTorch Linear weight; b: (D,) bias.
    Returns (w_t: (S, Dp) bf16, b2: (1, Dp) f32) with Dp = ceil(D / 128) * 128.
    """
    D, S = w.shape
    Dp = ((D + _LANE - 1) // _LANE) * _LANE
    w_t = jnp.transpose(w).astype(jnp.bfloat16)          # (S, D) channels-last for the MXU
    w_t = jnp.pad(w_t, ((0, 0), (0, Dp - D)))            # (S, Dp) lane-dense
    b2 = jnp.pad(b.astype(jnp.float32), (0, Dp - D)).reshape(1, Dp)
    return w_t, b2


@functools.partial(jax.jit, static_argnames=("out_dtype_name",))
def _linear_pallas(x_p, w_t, b2, *, out_dtype_name="float32"):
    """y_p = x_p @ w_t + b2 in a single Pallas grid step. x_p: (Bp, S); w_t: (S, Dp)."""
    Bp, S = x_p.shape
    Dp = w_t.shape[1]
    out_dtype = jnp.dtype(out_dtype_name)

    cost = pl.CostEstimate(
        flops=2 * Bp * S * Dp,
        transcendentals=0,
        bytes_accessed=(x_p.size * x_p.dtype.itemsize
                        + w_t.size * w_t.dtype.itemsize
                        + b2.size * b2.dtype.itemsize
                        + Bp * Dp * out_dtype.itemsize),
    )

    return pl.pallas_call(
        _proj_kernel,
        out_shape=jax.ShapeDtypeStruct((Bp, Dp), out_dtype),
        grid_spec=pltpu.PrefetchScalarGridSpec(
            num_scalar_prefetch=0,
            grid=(1,),                                   # single step: no pipeline overhead
            in_specs=[
                pl.BlockSpec((Bp, S), lambda i: (0, 0)),
                pl.BlockSpec((S, Dp), lambda i: (0, 0)),
                pl.BlockSpec((1, Dp), lambda i: (0, 0)),
            ],
            out_specs=pl.BlockSpec((Bp, Dp), lambda i: (0, 0)),
        ),
        compiler_params=pltpu.CompilerParams(
            dimension_semantics=("arbitrary",)),         # single TC; no megacore split needed
        cost_estimate=cost,
    )(x_p, w_t, b2)


def kernel_predictor(x, w_t, b2, *, enc_layer=4, kernel_size=9, in_ch=8, out_ch=8):
    """x: (B, style_dim); w_t/b2 from prepare_kernel_predictor_params.

    Returns the 6 PyTorch outputs (d_w, d_g, d_b, p_w, p_g, p_b)."""
    B, S = x.shape
    L, K = enc_layer, kernel_size

    d_w_ch = L * K * in_ch
    d_g_ch = L * in_ch
    d_b_ch = L * in_ch
    p_w_ch = L * in_ch * out_ch
    p_g_ch = L * out_ch
    p_b_ch = L * out_ch
    sizes = (d_w_ch, d_g_ch, d_b_ch, p_w_ch, p_g_ch, p_b_ch)
    D = sum(sizes)
    assert w_t.shape == (S, ((D + _LANE - 1) // _LANE) * _LANE), \
        "prepared weight does not match channel budget"

    # Sublane-pad the tiny activation (1 KiB) -> full unmasked vector stores in-kernel.
    Bp = max(_SUBLANE, ((B + _SUBLANE - 1) // _SUBLANE) * _SUBLANE)
    x_p = jnp.pad(x, ((0, Bp - B), (0, 0)))

    y_p = _linear_pallas(x_p, w_t, b2, out_dtype_name=str(x.dtype))
    y = y_p[:B, :D]                                      # (B, D)

    # Splits + reshapes are pure layout (no compute) -> plain JAX in the wrapper.
    parts, off = [], 0
    for s in sizes:
        parts.append(y[:, off:off + s])
        off += s
    d_w = parts[0].reshape(B, L, in_ch, 1, K)
    d_g = parts[1].reshape(B, L, in_ch)
    d_b = parts[2].reshape(B, L, in_ch)
    p_w = parts[3].reshape(B, L, out_ch, in_ch, 1)
    p_g = parts[4].reshape(B, L, out_ch)
    p_b = parts[5].reshape(B, L, out_ch)
    return d_w, d_g, d_b, p_w, p_g, p_b


def _reference(x, w_t, b2, D, *, enc_layer=4, kernel_size=9, in_ch=8, out_ch=8):
    """Pure-JAX reference using the same prepared (bf16) weight -> identical math path."""
    B = x.shape[0]
    L, K = enc_layer, kernel_size
    y = (jnp.dot(x, w_t.astype(jnp.float32)) + b2)[:, :D]
    sizes = (L * K * in_ch, L * in_ch, L * in_ch, L * in_ch * out_ch, L * out_ch, L * out_ch)
    parts, off = [], 0
    for s in sizes:
        parts.append(y[:, off:off + s])
        off += s
    return (parts[0].reshape(B, L, in_ch, 1, K),
            parts[1].reshape(B, L, in_ch),
            parts[2].reshape(B, L, in_ch),
            parts[3].reshape(B, L, out_ch, in_ch, 1),
            parts[4].reshape(B, L, out_ch),
            parts[5].reshape(B, L, out_ch))


if __name__ == "__main__":
    # Module defaults: style_dim=128, enc_layer=4, kernel_size=9, in_ch=8, out_ch=8 -> D = 672.
    B, STYLE = 2, 128
    L, K, IN_CH, OUT_CH = 4, 9, 8, 8
    D = L * K * IN_CH + 2 * L * IN_CH + L * IN_CH * OUT_CH + 2 * L * OUT_CH   # 672

    key = jax.random.PRNGKey(0)
    kx, kw, kb = jax.random.split(key, 3)
    x = jax.random.normal(kx, (B, STYLE), jnp.float32)
    w = jax.random.normal(kw, (D, STYLE), jnp.float32) * (1.0 / STYLE ** 0.5)
    b = jax.random.normal(kb, (D,), jnp.float32) * 0.01

    # One-time parameter prep (transpose + pad + bf16 cast) — outside the per-call hot path.
    w_t, b2 = prepare_kernel_predictor_params(w, b)

    outs = kernel_predictor(x, w_t, b2, enc_layer=L, kernel_size=K, in_ch=IN_CH, out_ch=OUT_CH)
    outs = jax.block_until_ready(outs)

    refs = _reference(x, w_t, b2, D, enc_layer=L, kernel_size=K, in_ch=IN_CH, out_ch=OUT_CH)
    expected_shapes = [(B, L, IN_CH, 1, K), (B, L, IN_CH), (B, L, IN_CH),
                       (B, L, OUT_CH, IN_CH, 1), (B, L, OUT_CH), (B, L, OUT_CH)]
    for o, r, s in zip(outs, refs, expected_shapes):
        assert o.shape == s, f"shape mismatch: {o.shape} vs {s}"
        assert jnp.allclose(o, r, atol=1e-4, rtol=1e-4), "mismatch vs reference"

    print("KERNEL_OK")
</pallas_src>

<mosaic_0001>
module attributes {stable_mosaic.version = 11 : i64} {
  func.func @_proj_kernel(%arg0: i32, %arg1: memref<8x128xf32, #tpu.memory_space<vmem>>, %arg2: memref<128x768xbf16, #tpu.memory_space<vmem>>, %arg3: memref<1x768xf32, #tpu.memory_space<vmem>>, %arg4: memref<8x768xf32, #tpu.memory_space<vmem>>) attributes {dimension_semantics = [#tpu.dimension_semantics<arbitrary>], iteration_bounds = array<i64: 1>, scalar_prefetch = 0 : i64, scratch_operands = 0 : i64, tpu.core_type = #tpu.core_type<tc>, window_params = [{pipeline_mode = #tpu.pipeline_mode<synchronous>, transform_indices = @transform_0, window_bounds = array<i64: 8, 128>}, {pipeline_mode = #tpu.pipeline_mode<synchronous>, transform_indices = @transform_1, window_bounds = array<i64: 128, 768>}, {pipeline_mode = #tpu.pipeline_mode<synchronous>, transform_indices = @transform_2, window_bounds = array<i64: 1, 768>}, {pipeline_mode = #tpu.pipeline_mode<synchronous>, transform_indices = @transform_3, window_bounds = array<i64: 8, 768>}]} {
    %c0 = arith.constant 0 : index
    %c0_0 = arith.constant 0 : index
    %0 = vector.load %arg1[%c0, %c0_0] : memref<8x128xf32, #tpu.memory_space<vmem>>, vector<8x128xf32>
    %c0_1 = arith.constant 0 : index
    %c0_2 = arith.constant 0 : index
    %1 = vector.load %arg2[%c0_1, %c0_2] : memref<128x768xbf16, #tpu.memory_space<vmem>>, vector<128x768xbf16>
    %cst = arith.constant dense<0.000000e+00> : vector<8x768xf32>
    %2 = tpu.matmul %0, %1, %cst {dimension_numbers = #tpu.dot_dimension_numbers<[1], [0], [0], [1], [0, 0, 1, 1], [], []>} : vector<8x128xf32>, vector<128x768xbf16>, vector<8x768xf32> -> vector<8x768xf32>
    %c0_3 = arith.constant 0 : index
    %c0_4 = arith.constant 0 : index
    %3 = vector.load %arg3[%c0_3, %c0_4] : memref<1x768xf32, #tpu.memory_space<vmem>>, vector<1x768xf32>
    %4 = vector.broadcast %3 : vector<1x768xf32> to vector<8x768xf32>
    %5 = arith.addf %2, %4 : vector<8x768xf32>
    %c0_5 = arith.constant 0 : index
    %c0_6 = arith.constant 0 : index
    %6 = vector.load %arg4[%c0_5, %c0_6] : memref<8x768xf32, #tpu.memory_space<vmem>>, vector<8x768xf32>
    tpu.vector_store %arg4[%c0_5, %c0_6], %5 {strides = array<i32>} : memref<8x768xf32, #tpu.memory_space<vmem>>, vector<8x768xf32>,
    return
  }
  func.func @transform_0(%arg0: i32) -> (i32, i32) {
    %c0_i32 = arith.constant 0 : i32
    %c0_i32_0 = arith.constant 0 : i32
    %c0_i32_1 = arith.constant 0 : i32
    return %c0_i32, %c0_i32_0 : i32, i32
  }
  func.func @transform_1(%arg0: i32) -> (i32, i32) {
    %c0_i32 = arith.constant 0 : i32
    %c0_i32_0 = arith.constant 0 : i32
    %c0_i32_1 = arith.constant 0 : i32
    return %c0_i32, %c0_i32_0 : i32, i32
  }
  func.func @transform_2(%arg0: i32) -> (i32, i32) {
    %c0_i32 = arith.constant 0 : i32
    %c0_i32_0 = arith.constant 0 : i32
    %c0_i32_1 = arith.constant 0 : i32
    return %c0_i32, %c0_i32_0 : i32, i32
  }
  func.func @transform_3(%arg0: i32) -> (i32, i32) {
    %c0_i32 = arith.constant 0 : i32
    %c0_i32_0 = arith.constant 0 : i32
    %c0_i32_1 = arith.constant 0 : i32
    return %c0_i32, %c0_i32_0 : i32, i32
  }
}

</mosaic_0001>

<llo_original>
// kernel: _linear_pallas.1
$region0: #{_linear_pallas.1}
  #allocation0 [shape = 'u32[]', space=smem, size = 0x4, offset = 0x4, fixed_abs, tag = 'smem constant byte address 0x4 - core index']
  #allocation1 [shape = 'u32[144,128]{1,0:T(1,128)}', space=vmem, size = 0x12000, scoped, tag = 'internal scratch']
  %s0 = inlined_call_operand.hbm [shape: f32[8,128], index: 0, kind: input, shape index: {}]
  %s1 = inlined_call_operand.hbm [shape: bf16[128,768], index: 1, kind: input, shape index: {}]
  %s2 = inlined_call_operand.vmem [shape: f32[1,768], index: 2, kind: input, shape index: {}]
  %s3 = inlined_call_operand.hbm [shape: f32[8,768], index: 3, kind: output, shape index: {}]
  %s4 = sld [smem:[#allocation0]]
  $region30: #{_linear_pallas.1} parent=0
    _
  %s6 = ssub.s32 1, %s4
  %s7 = scalar_select 0, %s6, %s4
  $region1: #{_linear_pallas.1} parent=0
    #allocation2 [shape = 'u8[4096]{0}', space=vmem, size = 0x1000, scoped, tag = 'input window, operand 0, single buffered']
    #allocation3 [shape = 's32[1]{0}', space=sflag, size = 0x4, scoped, tag = 'scoped memory for _linear_pallas.1']
    #allocation4 [shape = 's32[1]{0}', space=sflag, size = 0x4, scoped, tag = 'scoped memory for _linear_pallas.1']
    #allocation5 [shape = 'u8[196608]{0}', space=vmem, size = 0x30000, scoped, tag = 'input window, operand 1, single buffered']
    #allocation6 [shape = 's32[1]{0}', space=sflag, size = 0x4, scoped, tag = 'scoped memory for _linear_pallas.1']
    #allocation7 [shape = 'u8[24576]{0}', space=vmem, size = 0x6000, scoped, tag = 'output window, operand 0, single buffered']
    %8 = vsyncpa [#allocation3], 0
    %9 = vsyncpa [#allocation6], 0
    %10 = vsyncpa [#allocation4], 0
    // Predicated region
    $region2: #{_linear_pallas.1} parent=1 // pred_check
      _
    $region3: #{_linear_pallas.1} parent=1 // pred_check_branch
      %12 = sbr.rel (0) target = $region5
    $region4: #{_linear_pallas.1} parent=1 // pred_region
      %s14 = ssub.s32 128, 128
      %15 = vsyncadd [#allocation3], %s14
      %s17 = sshll.u32 [#allocation2], 4
      %s18 = int_to_ptr.vmem [resolvable:$true] %s17
      %20 = dma.hbm_to_vmem [thread:$0]  %s0, 128, %s18, [#allocation3]
    $region5: #{_linear_pallas.1} parent=1 // pred_fallthru
      _
    // Predicated region
    $region6: #{_linear_pallas.1} parent=1 // pred_check
      _
    $region7: #{_linear_pallas.1} parent=1 // pred_check_branch
      %22 = sbr.rel (0) target = $region9
    $region8: #{_linear_pallas.1} parent=1 // pred_region
      %s24 = ssub.s32 6144, 6144
      %25 = vsyncadd [#allocation6], %s24
      %s26 = sshll.u32 [#allocation5], 4
      %s27 = int_to_ptr.vmem [resolvable:$true] %s26
      %32 = dma.hbm_to_vmem [thread:$0]  %s1, 6144, %s27, [#allocation6], 384, 384, 24
    $region9: #{_linear_pallas.1} parent=1 // pred_fallthru
      _
    // Predicated region
    $region10: #{_linear_pallas.1} parent=1 // pred_check
      _
    $region11: #{_linear_pallas.1} parent=1 // pred_check_branch
      %34 = sbr.rel (0) target = $region13
    $region12: #{_linear_pallas.1} parent=1 // pred_region
      _
    $region13: #{_linear_pallas.1} parent=1 // pred_fallthru
      _
    // Predicated region
    $region14: #{_linear_pallas.1} parent=1 // pred_check
      _
    $region15: #{_linear_pallas.1} parent=1 // pred_check_branch
      %36 = sbr.rel (0) target = $region17
    $region16: #{_linear_pallas.1} parent=1 // pred_region
      %37 = dma.done [#allocation3], 128
    $region17: #{_linear_pallas.1} parent=1 // pred_fallthru
      _
    // Predicated region
    $region18: #{_linear_pallas.1} parent=1 // pred_check
      _
    $region19: #{_linear_pallas.1} parent=1 // pred_check_branch
      %39 = sbr.rel (0) target = $region21
    $region20: #{_linear_pallas.1} parent=1 // pred_region
      %40 = dma.done [#allocation6], 6144
    $region21: #{_linear_pallas.1} parent=1 // pred_fallthru
      _
    %v42 = vld [vmem:[#allocation2] sm:$0xff]
    %v43 = vld [vmem:[#allocation5] sm:$0xff]
    %v44 = vld [vmem:[#allocation5 + $0x8] sm:$0xff]
    %v45 = vld [vmem:[#allocation5 + $0x10] sm:$0xff]
    %v46 = vld [vmem:[#allocation5 + $0x18] sm:$0xff]
    %v47 = vld [vmem:[#allocation5 + $0x20] sm:$0xff]
    %v48 = vld [vmem:[#allocation5 + $0x28] sm:$0xff]
    %v49 = vld [vmem:[#allocation5 + $0x30] sm:$0xff]
    %v50 = vld [vmem:[#allocation5 + $0x38] sm:$0xff]
    %v51 = vld [vmem:[#allocation5 + $0x40] sm:$0xff]
    %v52 = vld [vmem:[#allocation5 + $0x48] sm:$0xff]
    %v53 = vld [vmem:[#allocation5 + $0x50] sm:$0xff]
    %v54 = vld [vmem:[#allocation5 + $0x58] sm:$0xff]
    %v55 = vld [vmem:[#allocation5 + $0x60] sm:$0xff]
    %v56 = vld [vmem:[#allocation5 + $0x68] sm:$0xff]
    %v57 = vld [vmem:[#allocation5 + $0x70] sm:$0xff]
    %v58 = vld [vmem:[#allocation5 + $0x78] sm:$0xff]
    %v59 = vld [vmem:[#allocation5 + $0x80] sm:$0xff]
    %v60 = vld [vmem:[#allocation5 + $0x88] sm:$0xff]
    %v61 = vld [vmem:[#allocation5 + $0x90] sm:$0xff]
    %v62 = vld [vmem:[#allocation5 + $0x98] sm:$0xff]
    %v63 = vld [vmem:[#allocation5 + $0xa0] sm:$0xff]
    %v64 = vld [vmem:[#allocation5 + $0xa8] sm:$0xff]
    %v65 = vld [vmem:[#allocation5 + $0xb0] sm:$0xff]
    %v66 = vld [vmem:[#allocation5 + $0xb8] sm:$0xff]
    %v67 = vld [vmem:[#allocation5 + $0xc0] sm:$0xff]
    %v68 = vld [vmem:[#allocation5 + $0xc8] sm:$0xff]
    %v69 = vld [vmem:[#allocation5 + $0xd0] sm:$0xff]
    %v70 = vld [vmem:[#allocation5 + $0xd8] sm:$0xff]
    %v71 = vld [vmem:[#allocation5 + $0xe0] sm:$0xff]
    %v72 = vld [vmem:[#allocation5 + $0xe8] sm:$0xff]
    %v73 = vld [vmem:[#allocation5 + $0xf0] sm:$0xff]
    %v74 = vld [vmem:[#allocation5 + $0xf8] sm:$0xff]
    %v75 = vld [vmem:[#allocation5 + $0x100] sm:$0xff]
    %v76 = vld [vmem:[#allocation5 + $0x108] sm:$0xff]
    %v77 = vld [vmem:[#allocation5 + $0x110] sm:$0xff]
    %v78 = vld [vmem:[#allocation5 + $0x118] sm:$0xff]
    %v79 = vld [vmem:[#allocation5 + $0x120] sm:$0xff]
    %v80 = vld [vmem:[#allocation5 + $0x128] sm:$0xff]
    %v81 = vld [vmem:[#allocation5 + $0x130] sm:$0xff]
    %v82 = vld [vmem:[#allocation5 + $0x138] sm:$0xff]
    %v83 = vld [vmem:[#allocation5 + $0x140] sm:$0xff]
    %v84 = vld [vmem:[#allocation5 + $0x148] sm:$0xff]
    %v85 = vld [vmem:[#allocation5 + $0x150] sm:$0xff]
    %v86 = vld [vmem:[#allocation5 + $0x158] sm:$0xff]
    %v87 = vld [vmem:[#allocation5 + $0x160] sm:$0xff]
    %v88 = vld [vmem:[#allocation5 + $0x168] sm:$0xff]
    %v89 = vld [vmem:[#allocation5 + $0x170] sm:$0xff]
    %v90 = vld [vmem:[#allocation5 + $0x178] sm:$0xff]
    %v91 = vld [vmem:[%s2] sm:$0x3f]
    %v93 = vlaneseq
    %v94 = vshrl.u32 %v93, 7
    %v95 = vsub.s32 0, %v94
    %v96 = vrot.slane %v91, %v95
    %v97 = vlaneseq
    %v98 = vshrl.u32 %v97, 7
    %v99 = vsub.s32 1, %v98
    %v100 = vrot.slane %v91, %v99
    %v101 = vlaneseq
    %v102 = vshrl.u32 %v101, 7
    %v103 = vsub.s32 2, %v102
    %v104 = vrot.slane %v91, %v103
    %v105 = vlaneseq
    %v106 = vshrl.u32 %v105, 7
    %v107 = vsub.s32 3, %v106
    %v108 = vrot.slane %v91, %v107
    %v109 = vlaneseq
    %v110 = vshrl.u32 %v109, 7
    %v111 = vsub.s32 4, %v110
    %v112 = vrot.slane %v91, %v111
    %v113 = vlaneseq
    %v114 = vshrl.u32 %v113, 7
    %v115 = vsub.s32 5, %v114
    %v116 = vrot.slane %v91, %v115
    %v171 = vunpack.c.l.b16 %v43
    %v172 = vunpack.c.h.b16 %v43
    %v173 = vunpack.c.l.b16 %v44
    %v174 = vunpack.c.h.b16 %v44
    %v175 = vunpack.c.l.b16 %v45
    %v176 = vunpack.c.h.b16 %v45
    %v177 = vunpack.c.l.b16 %v46
    %v178 = vunpack.c.h.b16 %v46
    %v179 = vunpack.c.l.b16 %v47
    %v180 = vunpack.c.h.b16 %v47
    %v181 = vunpack.c.l.b16 %v48
    %v182 = vunpack.c.h.b16 %v48
    %v183 = vunpack.c.l.b16 %v49
    %v184 = vunpack.c.h.b16 %v49
    %v185 = vunpack.c.l.b16 %v50
    %v186 = vunpack.c.h.b16 %v50
    %v187 = vunpack.c.l.b16 %v51
    %v188 = vunpack.c.h.b16 %v51
    %v189 = vunpack.c.l.b16 %v52
    %v190 = vunpack.c.h.b16 %v52
    %v191 = vunpack.c.l.b16 %v53
    %v192 = vunpack.c.h.b16 %v53
    %v193 = vunpack.c.l.b16 %v54
    %v194 = vunpack.c.h.b16 %v54
    %v195 = vunpack.c.l.b16 %v55
    %v196 = vunpack.c.h.b16 %v55
    %v197 = vunpack.c.l.b16 %v56
    %v198 = vunpack.c.h.b16 %v56
    %v199 = vunpack.c.l.b16 %v57
    %v200 = vunpack.c.h.b16 %v57
    %v201 = vunpack.c.l.b16 %v58
    %v202 = vunpack.c.h.b16 %v58
    %v203 = vunpack.c.l.b16 %v59
    %v204 = vunpack.c.h.b16 %v59
    %v205 = vunpack.c.l.b16 %v60
    %v206 = vunpack.c.h.b16 %v60
    %v207 = vunpack.c.l.b16 %v61
    %v208 = vunpack.c.h.b16 %v61
    %v209 = vunpack.c.l.b16 %v62
    %v210 = vunpack.c.h.b16 %v62
    %v211 = vunpack.c.l.b16 %v63
    %v212 = vunpack.c.h.b16 %v63
    %v213 = vunpack.c.l.b16 %v64
    %v214 = vunpack.c.h.b16 %v64
    %v215 = vunpack.c.l.b16 %v65
    %v216 = vunpack.c.h.b16 %v65
    %v217 = vunpack.c.l.b16 %v66
    %v218 = vunpack.c.h.b16 %v66
    %v219 = vunpack.c.l.b16 %v67
    %v220 = vunpack.c.h.b16 %v67
    %v221 = vunpack.c.l.b16 %v68
    %v222 = vunpack.c.h.b16 %v68
    %v223 = vunpack.c.l.b16 %v69
    %v224 = vunpack.c.h.b16 %v69
    %v225 = vunpack.c.l.b16 %v70
    %v226 = vunpack.c.h.b16 %v70
    %v227 = vunpack.c.l.b16 %v71
    %v228 = vunpack.c.h.b16 %v71
    %v229 = vunpack.c.l.b16 %v72
    %v230 = vunpack.c.h.b16 %v72
    %v231 = vunpack.c.l.b16 %v73
    %v232 = vunpack.c.h.b16 %v73
    %v233 = vunpack.c.l.b16 %v74
    %v234 = vunpack.c.h.b16 %v74
    %v235 = vunpack.c.l.b16 %v75
    %v236 = vunpack.c.h.b16 %v75
    %v237 = vunpack.c.l.b16 %v76
    %v238 = vunpack.c.h.b16 %v76
    %v239 = vunpack.c.l.b16 %v77
    %v240 = vunpack.c.h.b16 %v77
    %v241 = vunpack.c.l.b16 %v78
    %v242 = vunpack.c.h.b16 %v78
    %v243 = vunpack.c.l.b16 %v79
    %v244 = vunpack.c.h.b16 %v79
    %v245 = vunpack.c.l.b16 %v80
    %v246 = vunpack.c.h.b16 %v80
    %v247 = vunpack.c.l.b16 %v81
    %v248 = vunpack.c.h.b16 %v81
    %v249 = vunpack.c.l.b16 %v82
    %v250 = vunpack.c.h.b16 %v82
    %v251 = vunpack.c.l.b16 %v83
    %v252 = vunpack.c.h.b16 %v83
    %v253 = vunpack.c.l.b16 %v84
    %v254 = vunpack.c.h.b16 %v84
    %v255 = vunpack.c.l.b16 %v85
    %v256 = vunpack.c.h.b16 %v85
    %v257 = vunpack.c.l.b16 %v86
    %v258 = vunpack.c.h.b16 %v86
    %v259 = vunpack.c.l.b16 %v87
    %v260 = vunpack.c.h.b16 %v87
    %v261 = vunpack.c.l.b16 %v88
    %v262 = vunpack.c.h.b16 %v88
    %v263 = vunpack.c.l.b16 %v89
    %v264 = vunpack.c.h.b16 %v89
    %v265 = vunpack.c.l.b16 %v90
    %v266 = vunpack.c.h.b16 %v90
    %v267 = vpack.c.b16 %v177, %v171
    %v268 = vpack.c.b16 %v178, %v172
    %v269 = vpack.c.b16 %v179, %v173
    %v270 = vpack.c.b16 %v180, %v174
    %v271 = vpack.c.b16 %v181, %v175
    %v272 = vpack.c.b16 %v182, %v176
    %v273 = vpack.c.b16 %v189, %v183
    %v274 = vpack.c.b16 %v190, %v184
    %v275 = vpack.c.b16 %v191, %v185
    %v276 = vpack.c.b16 %v192, %v186
    %v277 = vpack.c.b16 %v193, %v187
    %v278 = vpack.c.b16 %v194, %v188
    %v279 = vpack.c.b16 %v201, %v195
    %v280 = vpack.c.b16 %v202, %v196
    %v281 = vpack.c.b16 %v203, %v197
    %v282 = vpack.c.b16 %v204, %v198
    %v283 = vpack.c.b16 %v205, %v199
    %v284 = vpack.c.b16 %v206, %v200
    %v285 = vpack.c.b16 %v213, %v207
    %v286 = vpack.c.b16 %v214, %v208
    %v287 = vpack.c.b16 %v215, %v209
    %v288 = vpack.c.b16 %v216, %v210
    %v289 = vpack.c.b16 %v217, %v211
    %v290 = vpack.c.b16 %v218, %v212
    %v291 = vpack.c.b16 %v225, %v219
    %v292 = vpack.c.b16 %v226, %v220
    %v293 = vpack.c.b16 %v227, %v221
    %v294 = vpack.c.b16 %v228, %v222
    %v295 = vpack.c.b16 %v229, %v223
    %v296 = vpack.c.b16 %v230, %v224
    %v297 = vpack.c.b16 %v237, %v231
    %v298 = vpack.c.b16 %v238, %v232
    %v299 = vpack.c.b16 %v239, %v233
    %v300 = vpack.c.b16 %v240, %v234
    %v301 = vpack.c.b16 %v241, %v235
    %v302 = vpack.c.b16 %v242, %v236
    %v303 = vpack.c.b16 %v249, %v243
    %v304 = vpack.c.b16 %v250, %v244
    %v305 = vpack.c.b16 %v251, %v245
    %v306 = vpack.c.b16 %v252, %v246
    %v307 = vpack.c.b16 %v253, %v247
    %v308 = vpack.c.b16 %v254, %v248
    %v309 = vpack.c.b16 %v261, %v255
    %v310 = vpack.c.b16 %v262, %v256
    %v311 = vpack.c.b16 %v263, %v257
    %v312 = vpack.c.b16 %v264, %v258
    %v313 = vpack.c.b16 %v265, %v259
    %v314 = vpack.c.b16 %v266, %v260
    %363 = vmatprep.subr.bf16.mxu0 %v268
    %364 = vmatpush1.bf16.msra.mxu0 %v267
    %365 = vmatprep.subr.bf16.mxu0 %v274
    %366 = vmatpush1.bf16.msra.mxu0 %v273
    %367 = vmatprep.subr.bf16.mxu0 %v280
    %368 = vmatpush1.bf16.msra.mxu0 %v279
    %369 = vmatprep.subr.bf16.mxu0 %v286
    %370 = vmatpush1.bf16.msra.mxu0 %v285
    %371 = vmatprep.subr.bf16.mxu0 %v292
    %372 = vmatpush1.bf16.msra.mxu0 %v291
    %373 = vmatprep.subr.bf16.mxu0 %v298
    %374 = vmatpush1.bf16.msra.mxu0 %v297
    %375 = vmatprep.subr.bf16.mxu0 %v304
    %376 = vmatpush1.bf16.msra.mxu0 %v303
    %377 = vmatprep.subr.bf16.mxu0 %v310
    %378 = vmatpush1.bf16.msra.mxu0 %v309
    %379 = vmatprep.subr.bf16.mxu0 0
    %380 = vmatpush1.bf16.msra.mxu0 0
    %381 = vmatprep.subr.bf16.mxu0 0
    %382 = vmatpush1.bf16.msra.mxu0 0
    %383 = vmatprep.subr.bf16.mxu0 0
    %384 = vmatpush1.bf16.msra.mxu0 0
    %385 = vmatprep.subr.bf16.mxu0 0
    %386 = vmatpush1.bf16.msra.mxu0 0
    %387 = vmatprep.subr.bf16.mxu0 0
    %388 = vmatpush1.bf16.msra.mxu0 0
    %389 = vmatprep.subr.bf16.mxu0 0
    %390 = vmatpush1.bf16.msra.mxu0 0
    %391 = vmatprep.subr.bf16.mxu0 0
    %392 = vmatpush1.bf16.msra.mxu0 0
    %393 = vmatprep.subr.bf16.mxu0 0
    %394 = vmatpush1.bf16.msra.mxu0 0
    %395 = vmatprep.mubr.f32.mxu0 0.0
    %396 = vmatmul.mubr.f32.gmra.mrb[0].mxu0 %v42
    %v397 = vpop.f32.mrb[0].mxu0
    %v398 = vadd.f32 %v96, %v397
    %v399 = vpop.f32.mrb[0].mxu0
    %v400 = vadd.f32 %v100, %v399
    %401 = vdwg.mxu0
    %402 = vmatprep.subr.bf16.mxu0 %v270
    %403 = vmatpush1.bf16.msra.mxu0 %v269
    %404 = vmatprep.subr.bf16.mxu0 %v276
    %405 = vmatpush1.bf16.msra.mxu0 %v275
    %406 = vmatprep.subr.bf16.mxu0 %v282
    %407 = vmatpush1.bf16.msra.mxu0 %v281
    %408 = vmatprep.subr.bf16.mxu0 %v288
    %409 = vmatpush1.bf16.msra.mxu0 %v287
    %410 = vmatprep.subr.bf16.mxu0 %v294
    %411 = vmatpush1.bf16.msra.mxu0 %v293
    %412 = vmatprep.subr.bf16.mxu0 %v300
    %413 = vmatpush1.bf16.msra.mxu0 %v299
    %414 = vmatprep.subr.bf16.mxu0 %v306
    %415 = vmatpush1.bf16.msra.mxu0 %v305
    %416 = vmatprep.subr.bf16.mxu0 %v312
    %417 = vmatpush1.bf16.msra.mxu0 %v311
    %418 = vmatprep.subr.bf16.mxu0 0
    %419 = vmatpush1.bf16.msra.mxu0 0
    %420 = vmatprep.subr.bf16.mxu0 0
    %421 = vmatpush1.bf16.msra.mxu0 0
    %422 = vmatprep.subr.bf16.mxu0 0
    %423 = vmatpush1.bf16.msra.mxu0 0
    %424 = vmatprep.subr.bf16.mxu0 0
    %425 = vmatpush1.bf16.msra.mxu0 0
    %426 = vmatprep.subr.bf16.mxu0 0
    %427 = vmatpush1.bf16.msra.mxu0 0
    %428 = vmatprep.subr.bf16.mxu0 0
    %429 = vmatpush1.bf16.msra.mxu0 0
    %430 = vmatprep.subr.bf16.mxu0 0
    %431 = vmatpush1.bf16.msra.mxu0 0
    %432 = vmatprep.subr.bf16.mxu0 0
    %433 = vmatpush1.bf16.msra.mxu0 0
    %434 = vmatprep.mubr.f32.mxu0 0.0
    %435 = vmatmul.mubr.f32.gmra.mrb[0].mxu0 %v42
    %v436 = vpop.f32.mrb[0].mxu0
    %v437 = vadd.f32 %v104, %v436
    %v438 = vpop.f32.mrb[0].mxu0
    %v439 = vadd.f32 %v108, %v438
    %440 = vdwg.mxu0
    %441 = vmatprep.subr.bf16.mxu0 %v272
    %442 = vmatpush1.bf16.msra.mxu0 %v271
    %443 = vmatprep.subr.bf16.mxu0 %v278
    %444 = vmatpush1.bf16.msra.mxu0 %v277
    %445 = vmatprep.subr.bf16.mxu0 %v284
    %446 = vmatpush1.bf16.msra.mxu0 %v283
    %447 = vmatprep.subr.bf16.mxu0 %v290
    %448 = vmatpush1.bf16.msra.mxu0 %v289
    %449 = vmatprep.subr.bf16.mxu0 %v296
    %450 = vmatpush1.bf16.msra.mxu0 %v295
    %451 = vmatprep.subr.bf16.mxu0 %v302
    %452 = vmatpush1.bf16.msra.mxu0 %v301
    %453 = vmatprep.subr.bf16.mxu0 %v308
    %454 = vmatpush1.bf16.msra.mxu0 %v307
    %455 = vmatprep.subr.bf16.mxu0 %v314
    %456 = vmatpush1.bf16.msra.mxu0 %v313
    %457 = vmatprep.subr.bf16.mxu0 0
    %458 = vmatpush1.bf16.msra.mxu0 0
    %459 = vmatprep.subr.bf16.mxu0 0
    %460 = vmatpush1.bf16.msra.mxu0 0
    %461 = vmatprep.subr.bf16.mxu0 0
    %462 = vmatpush1.bf16.msra.mxu0 0
    %463 = vmatprep.subr.bf16.mxu0 0
    %464 = vmatpush1.bf16.msra.mxu0 0
    %465 = vmatprep.subr.bf16.mxu0 0
    %466 = vmatpush1.bf16.msra.mxu0 0
    %467 = vmatprep.subr.bf16.mxu0 0
    %468 = vmatpush1.bf16.msra.mxu0 0
    %469 = vmatprep.subr.bf16.mxu0 0
    %470 = vmatpush1.bf16.msra.mxu0 0
    %471 = vmatprep.subr.bf16.mxu0 0
    %472 = vmatpush1.bf16.msra.mxu0 0
    %473 = vmatprep.mubr.f32.mxu0 0.0
    %474 = vmatmul.mubr.f32.gmra.mrb[0].mxu0 %v42
    %v475 = vpop.f32.mrb[0].mxu0
    %v476 = vadd.f32 %v112, %v475
    %v477 = vpop.f32.mrb[0].mxu0
    %v478 = vadd.f32 %v116, %v477
    %479 = vdwg.mxu0
    %480 = vst [vmem:[#allocation7] sm:$0xff] %v398
    %481 = vst [vmem:[#allocation7 + $0x8] sm:$0xff] %v400
    %482 = vst [vmem:[#allocation7 + $0x10] sm:$0xff] %v437
    %483 = vst [vmem:[#allocation7 + $0x18] sm:$0xff] %v439
    %484 = vst [vmem:[#allocation7 + $0x20] sm:$0xff] %v476
    %485 = vst [vmem:[#allocation7 + $0x28] sm:$0xff] %v478
    // Predicated region
    $region22: #{_linear_pallas.1} parent=1 // pred_check
      _
    $region23: #{_linear_pallas.1} parent=1 // pred_check_branch
      %487 = sbr.rel (0) target = $region25
    $region24: #{_linear_pallas.1} parent=1 // pred_region
      %s489 = ssub.s32 768, 768
      %490 = vsyncadd [#allocation4], %s489
      %s492 = sshll.u32 [#allocation7], 4
      %s493 = int_to_ptr.vmem [resolvable:$true] %s492
      %495 = dma.vmem_to_hbm [thread:$0]  %s493, 768, %s3, [#allocation4]
    $region25: #{_linear_pallas.1} parent=1 // pred_fallthru
      _
    // Predicated region
    $region26: #{_linear_pallas.1} parent=1 // pred_check
      _
    $region27: #{_linear_pallas.1} parent=1 // pred_check_branch
      %497 = sbr.rel (0) target = $region29
    $region28: #{_linear_pallas.1} parent=1 // pred_region
      %498 = dma.done [#allocation4], 768
    $region29: #{_linear_pallas.1} parent=1 // pred_fallthru
      _
    %499 = vsyncpa [#allocation3], 1
    %500 = vsyncpa [#allocation6], 1
    %501 = vsyncpa [#allocation4], 1

</llo_original>
